<compile_context>
chip_gen: v6e
topology: v6e:2x2x1
jax: 0.10.0
libtpu: 0.0.40
codegen_flags: <defaults>
</compile_context>

<pallas_src>
import jax
import jax.numpy as jnp
from jax.experimental import pallas as pl
from jax.experimental.pallas import tpu as pltpu

# Packed parameter buffer layout: one (8, 8) f32 tile (256 bytes).
ROW_W1_X0 = 0   # W1^T row 0  -> hidden-lane weights multiplying x[:, 0]
ROW_W1_X1 = 1   # W1^T row 1  -> hidden-lane weights multiplying x[:, 1]
ROW_B1    = 2   # b1 over hidden lanes
ROW_W2    = 3   # W2[0, :]    -> layer-2 weights over hidden lanes
ROW_B2    = 4   # b2 in lane 0
P_ROWS    = 8
P_LANES   = 8   # padded hidden width (real hidden = 2); zero lanes stay inert

BATCH_TILE = 256  # rows per grid step for large batches (XOR case: B=4, one step)


def mlp_kernel(x_ref, p_ref, o_ref):
    x = x_ref[...]                                          # (tb, 2) f32
    # Layer 1 on the VPU: K=2 is far too small to pay MXU fill latency.
    #   h[:, j] = tanh(x0 * W1[j,0] + x1 * W1[j,1] + b1[j]),  hidden on lanes.
    # Padded hidden lanes see 0*0+0*0+0 -> tanh(0) = 0.
    h = jnp.tanh(
        x[:, 0:1] * p_ref[ROW_W1_X0:ROW_W1_X0 + 1, :]
        + x[:, 1:2] * p_ref[ROW_W1_X1:ROW_W1_X1 + 1, :]
        + p_ref[ROW_B1:ROW_B1 + 1, :]
    )                                                       # (tb, P_LANES)
    # Layer 2 is the cross-lane contraction: VPU mul + XLU lane reduce.
    # Zero padded lanes in both h and the W2 row contribute nothing.
    y = jax.nn.sigmoid(
        jnp.sum(h * p_ref[ROW_W2:ROW_W2 + 1, :], axis=-1, keepdims=True)
        + p_ref[ROW_B2:ROW_B2 + 1, 0:1]
    )                                                       # (tb, 1)
    o_ref[...] = y.astype(o_ref.dtype)


def pack_params(w1, b1, w2, b2):
    """One-time packing of torch-layout Linear params into a single (8, 8) tile.

    w1: (2, 2) torch layout (out, in);  b1: (2,);  w2: (1, 2);  b2: (1,).
    """
    p = jnp.zeros((P_ROWS, P_LANES), jnp.float32)
    p = p.at[ROW_W1_X0, :2].set(w1[:, 0].astype(jnp.float32))  # W1^T row 0
    p = p.at[ROW_W1_X1, :2].set(w1[:, 1].astype(jnp.float32))  # W1^T row 1
    p = p.at[ROW_B1, :2].set(b1.astype(jnp.float32))
    p = p.at[ROW_W2, :2].set(w2[0, :].astype(jnp.float32))
    p = p.at[ROW_B2, 0].set(b2[0].astype(jnp.float32))
    return p


@jax.jit
def mlp_forward(x, params):
    """Forward pass.  x: (B, 2) float32.  Returns (B, 1) float32."""
    B = x.shape[0]
    x = x.astype(jnp.float32)

    if B <= BATCH_TILE:
        tb, Bp, xp = B, B, x            # single grid step, full-array blocks
    else:
        tb = BATCH_TILE
        Bp = ((B + tb - 1) // tb) * tb
        xp = jnp.zeros((Bp, 2), jnp.float32).at[:B].set(x)

    out = pl.pallas_call(
        mlp_kernel,
        out_shape=jax.ShapeDtypeStruct((Bp, 1), jnp.float32),
        grid=(Bp // tb,),
        in_specs=[
            pl.BlockSpec((tb, 2), lambda i: (i, 0)),
            # Same block every step -> packed weights stay VMEM-resident.
            pl.BlockSpec((P_ROWS, P_LANES), lambda i: (0, 0)),
        ],
        out_specs=pl.BlockSpec((tb, 1), lambda i: (i, 0)),
        compiler_params=pltpu.CompilerParams(
            dimension_semantics=("parallel",)),
    )(xp, params)

    return out[:B]


def init_params(key):
    """Deterministic init mimicking torch.nn.Linear: U(-1/sqrt(fan_in), +1/sqrt(fan_in))."""
    k1, k2, k3, k4 = jax.random.split(key, 4)
    bound = 1.0 / jnp.sqrt(2.0)  # fan_in = 2 for both layers
    w1 = jax.random.uniform(k1, (2, 2), jnp.float32, -bound, bound)
    b1 = jax.random.uniform(k2, (2,), jnp.float32, -bound, bound)
    w2 = jax.random.uniform(k3, (1, 2), jnp.float32, -bound, bound)
    b2 = jax.random.uniform(k4, (1,), jnp.float32, -bound, bound)
    return w1, b1, w2, b2


def reference_forward(x, w1, b1, w2, b2):
    h = jnp.tanh(x @ w1.T + b1)
    return jax.nn.sigmoid(h @ w2.T + b2)


if __name__ == "__main__":
    key = jax.random.PRNGKey(0)
    w1, b1, w2, b2 = init_params(key)

    # One-time parameter packing, outside the hot path.
    params = pack_params(w1, b1, w2, b2)

    # XOR inputs, exactly as in the PyTorch script.
    x = jnp.array([[0.0, 0.0], [0.0, 1.0], [1.0, 0.0], [1.0, 1.0]], dtype=jnp.float32)

    y = mlp_forward(x, params)
    y = jax.block_until_ready(y)

    y_ref = reference_forward(x, w1, b1, w2, b2)
    assert y.shape == (4, 1)
    assert jnp.allclose(y, y_ref, atol=1e-5), (y, y_ref)

    print("KERNEL_OK")
</pallas_src>

<mosaic_0001>
module attributes {stable_mosaic.version = 11 : i64} {
  func.func @mlp_kernel(%arg0: i32, %arg1: memref<4x2xf32, #tpu.memory_space<vmem>>, %arg2: memref<8x8xf32, #tpu.memory_space<vmem>>, %arg3: memref<4x1xf32, #tpu.memory_space<vmem>>) attributes {dimension_semantics = [#tpu.dimension_semantics<parallel>], iteration_bounds = array<i64: 1>, scalar_prefetch = 0 : i64, scratch_operands = 0 : i64, tpu.core_type = #tpu.core_type<tc>, window_params = [{transform_indices = @transform_0, window_bounds = array<i64: 4, 2>}, {pipeline_mode = #tpu.pipeline_mode<synchronous>, transform_indices = @transform_1, window_bounds = array<i64: 8, 8>}, {transform_indices = @transform_2, window_bounds = array<i64: 4, 1>}]} {
    %c0 = arith.constant 0 : index
    %c0_0 = arith.constant 0 : index
    %0 = vector.load %arg1[%c0, %c0_0] : memref<4x2xf32, #tpu.memory_space<vmem>>, vector<4x2xf32>
    %1 = vector.extract_strided_slice %0 {offsets = [0, 0], sizes = [4, 1], strides = [1, 1]} : vector<4x2xf32> to vector<4x1xf32>
    %c0_1 = arith.constant 0 : index
    %c0_2 = arith.constant 0 : index
    %2 = vector.load %arg2[%c0_1, %c0_2] : memref<8x8xf32, #tpu.memory_space<vmem>>, vector<1x8xf32>
    %3 = vector.broadcast %1 : vector<4x1xf32> to vector<4x8xf32>
    %4 = vector.broadcast %2 : vector<1x8xf32> to vector<4x8xf32>
    %5 = arith.mulf %3, %4 : vector<4x8xf32>
    %6 = vector.extract_strided_slice %0 {offsets = [0, 1], sizes = [4, 1], strides = [1, 1]} : vector<4x2xf32> to vector<4x1xf32>
    %c1 = arith.constant 1 : index
    %c0_3 = arith.constant 0 : index
    %7 = vector.load %arg2[%c1, %c0_3] : memref<8x8xf32, #tpu.memory_space<vmem>>, vector<1x8xf32>
    %8 = vector.broadcast %6 : vector<4x1xf32> to vector<4x8xf32>
    %9 = vector.broadcast %7 : vector<1x8xf32> to vector<4x8xf32>
    %10 = arith.mulf %8, %9 : vector<4x8xf32>
    %11 = arith.addf %5, %10 : vector<4x8xf32>
    %c2 = arith.constant 2 : index
    %c0_4 = arith.constant 0 : index
    %12 = vector.load %arg2[%c2, %c0_4] : memref<8x8xf32, #tpu.memory_space<vmem>>, vector<1x8xf32>
    %13 = vector.broadcast %12 : vector<1x8xf32> to vector<4x8xf32>
    %14 = arith.addf %11, %13 : vector<4x8xf32>
    %15 = math.tanh %14 : vector<4x8xf32>
    %c3 = arith.constant 3 : index
    %c0_5 = arith.constant 0 : index
    %16 = vector.load %arg2[%c3, %c0_5] : memref<8x8xf32, #tpu.memory_space<vmem>>, vector<1x8xf32>
    %17 = vector.broadcast %16 : vector<1x8xf32> to vector<4x8xf32>
    %18 = arith.mulf %15, %17 : vector<4x8xf32>
    %cst = arith.constant dense<0.000000e+00> : vector<4xf32>
    %19 = vector.multi_reduction <add>, %18, %cst [1] : vector<4x8xf32> to vector<4xf32>
    %20 = vector.shape_cast %19 : vector<4xf32> to vector<4x1xf32>
    %c4 = arith.constant 4 : index
    %c0_6 = arith.constant 0 : index
    %21 = vector.load %arg2[%c4, %c0_6] : memref<8x8xf32, #tpu.memory_space<vmem>>, vector<1x1xf32>
    %22 = vector.broadcast %21 : vector<1x1xf32> to vector<4x1xf32>
    %23 = arith.addf %20, %22 : vector<4x1xf32>
    %24 = arith.negf %23 : vector<4x1xf32>
    %25 = math.exp %24 : vector<4x1xf32>
    %cst_7 = arith.constant 1.000000e+00 : f32
    %26 = vector.broadcast %cst_7 : f32 to vector<4x1xf32>
    %27 = arith.addf %26, %25 : vector<4x1xf32>
    %28 = arith.divf %26, %27 : vector<4x1xf32>
    %c0_8 = arith.constant 0 : index
    %c0_9 = arith.constant 0 : index
    %29 = vector.load %arg3[%c0_8, %c0_9] : memref<4x1xf32, #tpu.memory_space<vmem>>, vector<4x1xf32>
    tpu.vector_store %arg3[%c0_8, %c0_9], %28 {strides = array<i32>} : memref<4x1xf32, #tpu.memory_space<vmem>>, vector<4x1xf32>,
    return
  }
  func.func @transform_0(%arg0: i32) -> (i32, i32) {
    %c0_i32 = arith.constant 0 : i32
    %c0_i32_0 = arith.constant 0 : i32
    return %arg0, %c0_i32 : i32, i32
  }
  func.func @transform_1(%arg0: i32) -> (i32, i32) {
    %c0_i32 = arith.constant 0 : i32
    %c0_i32_0 = arith.constant 0 : i32
    %c0_i32_1 = arith.constant 0 : i32
    return %c0_i32, %c0_i32_0 : i32, i32
  }
  func.func @transform_2(%arg0: i32) -> (i32, i32) {
    %c0_i32 = arith.constant 0 : i32
    %c0_i32_0 = arith.constant 0 : i32
    return %arg0, %c0_i32 : i32, i32
  }
}

</mosaic_0001>

<llo_original>
// kernel: mlp_forward.1
$region0: #{mlp_forward.1}
  #allocation0 [shape = 'u32[]', space=smem, size = 0x4, offset = 0x4, fixed_abs, tag = 'smem constant byte address 0x4 - core index']
  #allocation1 [shape = 'u32[144,128]{1,0:T(1,128)}', space=vmem, size = 0x12000, scoped, tag = 'internal scratch']
  %s0 = inlined_call_operand.vmem [shape: f32[4,2], index: 0, kind: input, shape index: {}]
  %s1 = inlined_call_operand.hbm [shape: f32[8,8], index: 1, kind: input, shape index: {}]
  %s2 = inlined_call_operand.vmem [shape: f32[4,1], index: 2, kind: output, shape index: {}]
  %s3 = sld [smem:[#allocation0]]
  $region22: #{mlp_forward.1} parent=0
    _
  %s5 = ssub.s32 1, %s3
  %s6 = scalar_select 0, %s5, %s3
  $region1: #{mlp_forward.1} parent=0
    #allocation2 [shape = 'u8[4096]{0}', space=vmem, size = 0x1000, scoped, tag = 'input window, operand 1, single buffered']
    #allocation3 [shape = 's32[1]{0}', space=sflag, size = 0x4, scoped, tag = 'scoped memory for mlp_forward.1']
    %7 = vsyncpa [#allocation3], 0
    // Predicated region
    $region2: #{mlp_forward.1} parent=1 // pred_check
      _
    $region3: #{mlp_forward.1} parent=1 // pred_check_branch
      %9 = sbr.rel (0) target = $region5
    $region4: #{mlp_forward.1} parent=1 // pred_region
      _
    $region5: #{mlp_forward.1} parent=1 // pred_fallthru
      _
    // Predicated region
    $region6: #{mlp_forward.1} parent=1 // pred_check
      _
    $region7: #{mlp_forward.1} parent=1 // pred_check_branch
      %11 = sbr.rel (0) target = $region9
    $region8: #{mlp_forward.1} parent=1 // pred_region
      %s13 = ssub.s32 128, 128
      %14 = vsyncadd [#allocation3], %s13
      %s16 = sshll.u32 [#allocation2], 4
      %s17 = int_to_ptr.vmem [resolvable:$true] %s16
      %19 = dma.hbm_to_vmem [thread:$0]  %s1, 128, %s17, [#allocation3]
    $region9: #{mlp_forward.1} parent=1 // pred_fallthru
      _
    // Predicated region
    $region10: #{mlp_forward.1} parent=1 // pred_check
      _
    $region11: #{mlp_forward.1} parent=1 // pred_check_branch
      %21 = sbr.rel (0) target = $region13
    $region12: #{mlp_forward.1} parent=1 // pred_region
      %22 = dma.done [#allocation3], 128
    $region13: #{mlp_forward.1} parent=1 // pred_fallthru
      _
    %v23 = vld [vmem:[%s0] sm:$0xf]
    %v24 = vld [vmem:[#allocation2] sm:$0x1]
    %26 = vset.pattern.permute.xlu0 0
    %27 = vperm.xlu0 %26, %v23
    %v28 = vpop.permute.xlu0 %27
    %v30 = vlaneseq
    %v31 = vshrl.u32 %v30, 7
    %v32 = vsub.s32 0, %v31
    %v33 = vrot.slane %v24, %v32
    %v34 = vmul.f32 %v28, %v33
    %v35 = vld [vmem:[#allocation2 + $0x1] sm:$0x1]
    %36 = vset.pattern.permute.xlu0 1
    %37 = vperm.xlu0 %36, %v23
    %v38 = vpop.permute.xlu0 %37
    %v40 = vlaneseq
    %v41 = vshrl.u32 %v40, 7
    %v42 = vsub.s32 0, %v41
    %v43 = vrot.slane %v35, %v42
    %v44 = vmul.f32 %v38, %v43
    %v45 = vadd.f32 %v34, %v44
    %v46 = vld [vmem:[#allocation2 + $0x2] sm:$0x1]
    %v47 = vlaneseq
    %v48 = vshrl.u32 %v47, 7
    %v49 = vsub.s32 0, %v48
    %v50 = vrot.slane %v46, %v49
    %v51 = vadd.f32 %v45, %v50
    %v52 = vtanh.pop %v51
    %v53 = vld [vmem:[#allocation2 + $0x3] sm:$0x1]
    %v54 = vlaneseq
    %v55 = vshrl.u32 %v54, 7
    %v56 = vsub.s32 0, %v55
    %v57 = vrot.slane %v53, %v56
    %v58 = vmul.f32 %v52, %v57
    %vm59 = vcmask 60416
    %v60 = vsel %vm59, %v58, 0.0
    %61 = vadd.xlane.f32.xlu0 %v60
    %v62 = vpop.xlane.xlu0 %61
    %v63 = vld [vmem:[#allocation2 + $0x4] sm:$0x1]
    %v64 = vlaneseq
    %v65 = vshrl.u32 %v64, 7
    %v66 = vsub.s32 0, %v65
    %v67 = vrot.slane %v63, %v66
    %v68 = vadd.f32 %v62, %v67
    %v69 = vxor.u32 %v68, 2147483648
    %v70 = vmul.f32 %v69, 1.442695
    %v71 = vpow.pop %v70
    %v72 = vadd.f32 %v71, 1.0
    %v73 = vrcp.pop %v72
    %v74 = vmul.f32 1.0, %v73
    %vm75 = vcmask 3072
    %76 = vst.msk [vmem:[%s2] sm:$0xf] %vm75, %v74
    // Predicated region
    $region14: #{mlp_forward.1} parent=1 // pred_check
      _
    $region15: #{mlp_forward.1} parent=1 // pred_check_branch
      %78 = sbr.rel (0) target = $region17
    $region16: #{mlp_forward.1} parent=1 // pred_region
      _
    $region17: #{mlp_forward.1} parent=1 // pred_fallthru
      _
    // Predicated region
    $region18: #{mlp_forward.1} parent=1 // pred_check
      _
    $region19: #{mlp_forward.1} parent=1 // pred_check_branch
      %80 = sbr.rel (0) target = $region21
    $region20: #{mlp_forward.1} parent=1 // pred_region
      _
    $region21: #{mlp_forward.1} parent=1 // pred_fallthru
      _
    %81 = vsyncpa [#allocation3], 1

</llo_original>
